<compile_context>
chip_gen: v6e
topology: v6e:2x2x1
jax: 0.10.0
libtpu: 0.0.40
codegen_flags: <defaults>
</compile_context>

<pallas_src>
import functools

import jax
import jax.numpy as jnp
from jax import lax
from jax.experimental import pallas as pl
from jax.experimental.pallas import tpu as pltpu


def _round_up(x, m):
    return ((x + m - 1) // m) * m


def _cdiv(a, b):
    return (a + b - 1) // b


def _vmem_budget_bytes():
    # Generation-aware VMEM budget: ~13/16 of physical capacity
    # (~104 MiB on v5e/v6e's 128 MiB, ~52 MiB on v7x's 64 MiB), leaving headroom
    # for Pallas-internal scratch.
    try:
        cap = int(pltpu.get_tpu_info().vmem_capacity_bytes)
    except Exception:
        cap = 64 * 1024 * 1024  # conservative (v7x-sized) fallback
    return (cap * 13) // 16


def _pick_tile_n(n_pad, d_pad, itemsize, vmem_budget):
    """Scale the batch tile with D_pad so double-buffered input tiles + resident
    Gram accumulators stay inside the per-generation VMEM budget."""
    acc_bytes = 2 * d_pad * d_pad * 4 + 8 * d_pad * 4   # resident f32 accumulators
    slack = 4 * 1024 * 1024
    avail = vmem_budget - acc_bytes - slack
    per_row = 4 * d_pad * itemsize                      # 2 inputs x 2 pipeline bufs
    t = avail // per_row if avail > 0 else 8
    t = min(t, 2048, n_pad)                             # amortize ~0.35us/step overhead
    return max(8, (t // 8) * 8)


def _make_vicreg_stats_kernel(n_rows, tile_n, tiles_per_core, needs_mask):
    n_rows = int(n_rows)
    tile_n = int(tile_n)
    tiles_per_core = int(tiles_per_core)

    def kernel(lat_ref, sim_ref, gram_l_ref, gram_s_ref, mom_ref):
        t = pl.program_id(1)

        @pl.when(t == 0)
        def _init():
            gram_l_ref[...] = jnp.zeros_like(gram_l_ref)
            gram_s_ref[...] = jnp.zeros_like(gram_s_ref)
            mom_ref[...] = jnp.zeros_like(mom_ref)

        lat = lat_ref[...]          # native dtype -> fast MXU path if bf16
        sim = sim_ref[...]

        if needs_mask:
            # Unclamped global tile index -> zero out rows past the true batch size
            # (ragged last tile / overhang steps from the per-core split).
            g = pl.program_id(0) * tiles_per_core + t
            row = lax.broadcasted_iota(jnp.int32, (tile_n, 1), 0) + g * tile_n
            valid = row < n_rows
            lat = jnp.where(valid, lat, 0)
            sim = jnp.where(valid, sim, 0)

        # Moments rows: 0 = sum(lat), 1 = sum(sim), 2 = per-column alignment partial.
        # (Cheap VPU filler hidden under the MXU work; no separate sq accumulators —
        #  sum(z^2) comes from the Gram diagonal at finalize.)
        mom_ref[0:1, :] += jnp.sum(lat, axis=0, keepdims=True, dtype=jnp.float32)
        mom_ref[1:2, :] += jnp.sum(sim, axis=0, keepdims=True, dtype=jnp.float32)
        diff = sim.astype(jnp.float32) - lat.astype(jnp.float32)
        mom_ref[2:3, :] += jnp.sum(diff * diff, axis=0, keepdims=True)

        # Uncentered Grams Z^T Z accumulated on the MXU with f32 accumulation,
        # directly into the resident per-core output blocks.
        # TODO(synk): verify in the Mosaic dump that the transposed-LHS contraction
        # folds into the MXU push (no per-step vxpose of the (tile_n, D) block).
        dims = (((0,), (0,)), ((), ()))
        gram_l_ref[...] += lax.dot_general(
            lat, lat, dimension_numbers=dims, preferred_element_type=jnp.float32)
        gram_s_ref[...] += lax.dot_general(
            sim, sim, dimension_numbers=dims, preferred_element_type=jnp.float32)

    return kernel


@functools.partial(jax.jit, static_argnames=(
    "gamma", "eps", "lambda_c", "mu_c", "nu_c", "tile_n"))
def vicreg_loss(latents, similar_latents,
                gamma=1.0, eps=1e-6, lambda_c=25, mu_c=25, nu_c=1,
                tile_n=None):
    assert latents.shape == similar_latents.shape and latents.ndim == 2
    N, D = map(int, latents.shape)
    itemsize = jnp.dtype(latents.dtype).itemsize

    # Lane-dense feature axis (multiple of 128); rows to a multiple of 8 sublanes.
    # Only copy through HBM when padding is actually required.
    D_pad = _round_up(max(D, 1), 128)
    N_pad = _round_up(max(N, 1), 8)
    if (N_pad != N) or (D_pad != D):
        pad = ((0, N_pad - N), (0, D_pad - D))
        latents = jnp.pad(latents, pad)
        similar_latents = jnp.pad(similar_latents, pad)

    vmem_budget = _vmem_budget_bytes()
    # TODO(synk): for D_pad large enough that the two (D_pad, D_pad) f32 Grams blow
    # the VMEM budget (~2.5k cols on v7x, ~3.5k on v5e/v6e) switch to a column-tiled
    # or N x N row-Gram covariance formulation.
    if tile_n is None:
        tile_n = _pick_tile_n(N_pad, D_pad, itemsize, vmem_budget)
    tile_n = max(8, min(_round_up(int(tile_n), 8), N_pad))

    num_tiles = _cdiv(N_pad, tile_n)
    num_cores = 2 if num_tiles >= 2 else 1      # v7x: shard the reduction over both TCs
    tiles_per_core = _cdiv(num_tiles, num_cores)
    needs_mask = (num_cores * tiles_per_core * tile_n != N_pad)
    last_block = num_tiles - 1

    def in_map(c, t):
        # Clamp so overhang steps stay in range; their rows are masked to zero inside
        # the kernel using the *unclamped* global tile index.
        return (jnp.minimum(c * tiles_per_core + t, last_block), 0)

    kernel = _make_vicreg_stats_kernel(N, tile_n, tiles_per_core, needs_mask)

    gram_l, gram_s, moments = pl.pallas_call(
        kernel,
        out_shape=(
            jax.ShapeDtypeStruct((num_cores, D_pad, D_pad), jnp.float32),
            jax.ShapeDtypeStruct((num_cores, D_pad, D_pad), jnp.float32),
            jax.ShapeDtypeStruct((num_cores, 8, D_pad), jnp.float32),
        ),
        grid_spec=pltpu.PrefetchScalarGridSpec(
            num_scalar_prefetch=0,
            grid=(num_cores, tiles_per_core),
            in_specs=[
                pl.BlockSpec((tile_n, D_pad), in_map),
                pl.BlockSpec((tile_n, D_pad), in_map),
            ],
            out_specs=(
                pl.BlockSpec((None, D_pad, D_pad), lambda c, t: (c, 0, 0)),
                pl.BlockSpec((None, D_pad, D_pad), lambda c, t: (c, 0, 0)),
                pl.BlockSpec((None, 8, D_pad), lambda c, t: (c, 0, 0)),
            ),
        ),
        compiler_params=pltpu.CompilerParams(
            dimension_semantics=("parallel", "arbitrary"),
            vmem_limit_bytes=int(vmem_budget),
        ),
    )(latents, similar_latents)

    # ---- tiny O(D^2) finalize in plain JAX: combine per-core partials ----
    gram_l = jnp.sum(gram_l, axis=0)[:D, :D]
    gram_s = jnp.sum(gram_s, axis=0)[:D, :D]
    mom = jnp.sum(moments, axis=0)
    sum_l, sum_s, align_cols = mom[0, :D], mom[1, :D], mom[2, :D]

    n = float(N)
    d = float(D)
    inv_nm1 = 1.0 / (n - 1.0) if N > 1 else float("nan")   # torch.var/cov: nan for N=1

    def var_cov_losses(gram, colsum):
        mu = colsum / n
        sq = jnp.diagonal(gram)                              # sum(z^2) per column
        var = (sq - n * mu * mu) * inv_nm1
        dev = jnp.sqrt(jnp.maximum(var, 0.0) + eps)          # clamp: f32 cancellation
        v_loss = jnp.mean(jnp.maximum(gamma - dev, 0.0))
        cov = (gram - n * jnp.outer(mu, mu)) * inv_nm1
        c_loss = (jnp.sum(cov * cov) - jnp.sum(jnp.diagonal(cov) ** 2)) / d
        return v_loss, c_loss

    v_l, c_l = var_cov_losses(gram_l, sum_l)
    v_s, c_s = var_cov_losses(gram_s, sum_s)
    a_loss = jnp.sum(align_cols) / n

    return mu_c * (v_l + v_s) + nu_c * (c_l + c_s) + lambda_c * a_loss


def _vicreg_loss_ref(latents, similar_latents,
                     gamma=1.0, eps=1e-6, lambda_c=25, mu_c=25, nu_c=1):
    """Plain-JAX reference mirroring the PyTorch module."""
    def var_loss(z):
        var = jnp.var(z, axis=0, ddof=1)
        return jnp.mean(jax.nn.relu(gamma - jnp.sqrt(var + eps)))

    def cov_loss(z):
        d = z.shape[1]
        zc = z - jnp.mean(z, axis=0, keepdims=True)
        cov = (zc.T @ zc) / (z.shape[0] - 1)
        mask = 1.0 - jnp.eye(d, dtype=cov.dtype)
        return jnp.sum((cov * mask) ** 2) / d

    def align_loss(l, s):
        return jnp.mean(jnp.sum((s - l) ** 2, axis=1))

    l1 = mu_c * (var_loss(latents) + var_loss(similar_latents))
    l2 = nu_c * (cov_loss(latents) + cov_loss(similar_latents))
    l3 = lambda_c * align_loss(latents, similar_latents)
    return l1 + l2 + l3


if __name__ == "__main__":
    key = jax.random.PRNGKey(0)
    k1, k2 = jax.random.split(key)
    N, D = 8, 32  # small (batch, latent_dim)
    latents = jax.random.normal(k1, (N, D), dtype=jnp.float32)
    similar_latents = latents + 0.1 * jax.random.normal(k2, (N, D), dtype=jnp.float32)

    out = vicreg_loss(latents, similar_latents)
    out = jax.block_until_ready(out)

    ref = _vicreg_loss_ref(latents, similar_latents)
    assert jnp.allclose(out, ref, rtol=1e-4, atol=1e-4), (out, ref)
    print("KERNEL_OK")
</pallas_src>

<mosaic_0001>
module attributes {stable_mosaic.version = 11 : i64} {
  func.func @kernel(%arg0: i32, %arg1: i32, %arg2: memref<8x128xf32, #tpu.memory_space<vmem>>, %arg3: memref<8x128xf32, #tpu.memory_space<vmem>>, %arg4: memref<1x128x128xf32, #tpu.memory_space<vmem>>, %arg5: memref<1x128x128xf32, #tpu.memory_space<vmem>>, %arg6: memref<1x8x128xf32, #tpu.memory_space<vmem>>) attributes {dimension_semantics = [#tpu.dimension_semantics<parallel>, #tpu.dimension_semantics<arbitrary>], iteration_bounds = array<i64: 1, 1>, scalar_prefetch = 0 : i64, scratch_operands = 0 : i64, tpu.core_type = #tpu.core_type<tc>, window_params = [{transform_indices = @transform_0, window_bounds = array<i64: 8, 128>}, {transform_indices = @transform_1, window_bounds = array<i64: 8, 128>}, {transform_indices = @transform_2, window_bounds = array<i64: 1, 128, 128>}, {transform_indices = @transform_3, window_bounds = array<i64: 1, 128, 128>}, {transform_indices = @transform_4, window_bounds = array<i64: 1, 8, 128>}]} {
    %c0_i32 = arith.constant 0 : i32
    %0 = arith.cmpi eq, %arg1, %c0_i32 : i32
    %1 = arith.extui %0 : i1 to i32
    %c0_i32_0 = arith.constant 0 : i32
    %2 = arith.cmpi ne, %1, %c0_i32_0 : i32
    scf.if %2 {
      %cst_36 = arith.constant 0.000000e+00 : f32
      %45 = vector.broadcast %cst_36 : f32 to vector<128x128xf32>
      %c0_37 = arith.constant 0 : index
      %c0_38 = arith.constant 0 : index
      %c0_39 = arith.constant 0 : index
      %46 = vector.load %arg4[%c0_37, %c0_38, %c0_39] : memref<1x128x128xf32, #tpu.memory_space<vmem>>, vector<1x128x128xf32>
      %47 = vector.shape_cast %46 : vector<1x128x128xf32> to vector<128x128xf32>
      %48 = vector.shape_cast %45 : vector<128x128xf32> to vector<1x128x128xf32>
      tpu.vector_store %arg4[%c0_37, %c0_38, %c0_39], %48 {strides = array<i32>} : memref<1x128x128xf32, #tpu.memory_space<vmem>>, vector<1x128x128xf32>,
      %cst_40 = arith.constant 0.000000e+00 : f32
      %49 = vector.broadcast %cst_40 : f32 to vector<128x128xf32>
      %c0_41 = arith.constant 0 : index
      %c0_42 = arith.constant 0 : index
      %c0_43 = arith.constant 0 : index
      %50 = vector.load %arg5[%c0_41, %c0_42, %c0_43] : memref<1x128x128xf32, #tpu.memory_space<vmem>>, vector<1x128x128xf32>
      %51 = vector.shape_cast %50 : vector<1x128x128xf32> to vector<128x128xf32>
      %52 = vector.shape_cast %49 : vector<128x128xf32> to vector<1x128x128xf32>
      tpu.vector_store %arg5[%c0_41, %c0_42, %c0_43], %52 {strides = array<i32>} : memref<1x128x128xf32, #tpu.memory_space<vmem>>, vector<1x128x128xf32>,
      %cst_44 = arith.constant 0.000000e+00 : f32
      %53 = vector.broadcast %cst_44 : f32 to vector<8x128xf32>
      %c0_45 = arith.constant 0 : index
      %c0_46 = arith.constant 0 : index
      %c0_47 = arith.constant 0 : index
      %54 = vector.load %arg6[%c0_45, %c0_46, %c0_47] : memref<1x8x128xf32, #tpu.memory_space<vmem>>, vector<1x8x128xf32>
      %55 = vector.shape_cast %54 : vector<1x8x128xf32> to vector<8x128xf32>
      %56 = vector.shape_cast %53 : vector<8x128xf32> to vector<1x8x128xf32>
      tpu.vector_store %arg6[%c0_45, %c0_46, %c0_47], %56 {strides = array<i32>} : memref<1x8x128xf32, #tpu.memory_space<vmem>>, vector<1x8x128xf32>,
    } else {
    }
    %c0 = arith.constant 0 : index
    %c0_1 = arith.constant 0 : index
    %3 = vector.load %arg2[%c0, %c0_1] : memref<8x128xf32, #tpu.memory_space<vmem>>, vector<8x128xf32>
    %c0_2 = arith.constant 0 : index
    %c0_3 = arith.constant 0 : index
    %4 = vector.load %arg3[%c0_2, %c0_3] : memref<8x128xf32, #tpu.memory_space<vmem>>, vector<8x128xf32>
    %c0_4 = arith.constant 0 : index
    %c0_5 = arith.constant 0 : index
    %c0_6 = arith.constant 0 : index
    %5 = vector.load %arg6[%c0_4, %c0_5, %c0_6] : memref<1x8x128xf32, #tpu.memory_space<vmem>>, vector<1x1x128xf32>
    %6 = vector.shape_cast %5 : vector<1x1x128xf32> to vector<1x128xf32>
    %cst = arith.constant dense<0.000000e+00> : vector<128xf32>
    %7 = vector.multi_reduction <add>, %3, %cst [0] : vector<8x128xf32> to vector<128xf32>
    %8 = vector.shape_cast %7 : vector<128xf32> to vector<1x128xf32>
    %9 = arith.addf %6, %8 : vector<1x128xf32>
    %c0_7 = arith.constant 0 : index
    %c0_8 = arith.constant 0 : index
    %c0_9 = arith.constant 0 : index
    %10 = vector.load %arg6[%c0_7, %c0_8, %c0_9] : memref<1x8x128xf32, #tpu.memory_space<vmem>>, vector<1x1x128xf32>
    %11 = vector.shape_cast %10 : vector<1x1x128xf32> to vector<1x128xf32>
    %12 = vector.shape_cast %9 : vector<1x128xf32> to vector<1x1x128xf32>
    tpu.vector_store %arg6[%c0_7, %c0_8, %c0_9], %12 {strides = array<i32>} : memref<1x8x128xf32, #tpu.memory_space<vmem>>, vector<1x1x128xf32>,
    %c0_10 = arith.constant 0 : index
    %c1 = arith.constant 1 : index
    %c0_11 = arith.constant 0 : index
    %13 = vector.load %arg6[%c0_10, %c1, %c0_11] : memref<1x8x128xf32, #tpu.memory_space<vmem>>, vector<1x1x128xf32>
    %14 = vector.shape_cast %13 : vector<1x1x128xf32> to vector<1x128xf32>
    %cst_12 = arith.constant dense<0.000000e+00> : vector<128xf32>
    %15 = vector.multi_reduction <add>, %4, %cst_12 [0] : vector<8x128xf32> to vector<128xf32>
    %16 = vector.shape_cast %15 : vector<128xf32> to vector<1x128xf32>
    %17 = arith.addf %14, %16 : vector<1x128xf32>
    %c0_13 = arith.constant 0 : index
    %c1_14 = arith.constant 1 : index
    %c0_15 = arith.constant 0 : index
    %18 = vector.load %arg6[%c0_13, %c1_14, %c0_15] : memref<1x8x128xf32, #tpu.memory_space<vmem>>, vector<1x1x128xf32>
    %19 = vector.shape_cast %18 : vector<1x1x128xf32> to vector<1x128xf32>
    %20 = vector.shape_cast %17 : vector<1x128xf32> to vector<1x1x128xf32>
    tpu.vector_store %arg6[%c0_13, %c1_14, %c0_15], %20 {strides = array<i32>} : memref<1x8x128xf32, #tpu.memory_space<vmem>>, vector<1x1x128xf32>,
    %21 = arith.subf %4, %3 : vector<8x128xf32>
    %c0_16 = arith.constant 0 : index
    %c2 = arith.constant 2 : index
    %c0_17 = arith.constant 0 : index
    %22 = vector.load %arg6[%c0_16, %c2, %c0_17] : memref<1x8x128xf32, #tpu.memory_space<vmem>>, vector<1x1x128xf32>
    %23 = vector.shape_cast %22 : vector<1x1x128xf32> to vector<1x128xf32>
    %24 = arith.mulf %21, %21 : vector<8x128xf32>
    %cst_18 = arith.constant dense<0.000000e+00> : vector<128xf32>
    %25 = vector.multi_reduction <add>, %24, %cst_18 [0] : vector<8x128xf32> to vector<128xf32>
    %26 = vector.shape_cast %25 : vector<128xf32> to vector<1x128xf32>
    %27 = arith.addf %23, %26 : vector<1x128xf32>
    %c0_19 = arith.constant 0 : index
    %c2_20 = arith.constant 2 : index
    %c0_21 = arith.constant 0 : index
    %28 = vector.load %arg6[%c0_19, %c2_20, %c0_21] : memref<1x8x128xf32, #tpu.memory_space<vmem>>, vector<1x1x128xf32>
    %29 = vector.shape_cast %28 : vector<1x1x128xf32> to vector<1x128xf32>
    %30 = vector.shape_cast %27 : vector<1x128xf32> to vector<1x1x128xf32>
    tpu.vector_store %arg6[%c0_19, %c2_20, %c0_21], %30 {strides = array<i32>} : memref<1x8x128xf32, #tpu.memory_space<vmem>>, vector<1x1x128xf32>,
    %c0_22 = arith.constant 0 : index
    %c0_23 = arith.constant 0 : index
    %c0_24 = arith.constant 0 : index
    %31 = vector.load %arg4[%c0_22, %c0_23, %c0_24] : memref<1x128x128xf32, #tpu.memory_space<vmem>>, vector<1x128x128xf32>
    %32 = vector.shape_cast %31 : vector<1x128x128xf32> to vector<128x128xf32>
    %cst_25 = arith.constant dense<0.000000e+00> : vector<128x128xf32>
    %33 = tpu.matmul %3, %3, %cst_25 {dimension_numbers = #tpu.dot_dimension_numbers<[0], [0], [1], [1], [0, 1, 1, 1], [], []>} : vector<8x128xf32>, vector<8x128xf32>, vector<128x128xf32> -> vector<128x128xf32>
    %34 = arith.addf %32, %33 : vector<128x128xf32>
    %c0_26 = arith.constant 0 : index
    %c0_27 = arith.constant 0 : index
    %c0_28 = arith.constant 0 : index
    %35 = vector.load %arg4[%c0_26, %c0_27, %c0_28] : memref<1x128x128xf32, #tpu.memory_space<vmem>>, vector<1x128x128xf32>
    %36 = vector.shape_cast %35 : vector<1x128x128xf32> to vector<128x128xf32>
    %37 = vector.shape_cast %34 : vector<128x128xf32> to vector<1x128x128xf32>
    tpu.vector_store %arg4[%c0_26, %c0_27, %c0_28], %37 {strides = array<i32>} : memref<1x128x128xf32, #tpu.memory_space<vmem>>, vector<1x128x128xf32>,
    %c0_29 = arith.constant 0 : index
    %c0_30 = arith.constant 0 : index
    %c0_31 = arith.constant 0 : index
    %38 = vector.load %arg5[%c0_29, %c0_30, %c0_31] : memref<1x128x128xf32, #tpu.memory_space<vmem>>, vector<1x128x128xf32>
    %39 = vector.shape_cast %38 : vector<1x128x128xf32> to vector<128x128xf32>
    %cst_32 = arith.constant dense<0.000000e+00> : vector<128x128xf32>
    %40 = tpu.matmul %4, %4, %cst_32 {dimension_numbers = #tpu.dot_dimension_numbers<[0], [0], [1], [1], [0, 1, 1, 1], [], []>} : vector<8x128xf32>, vector<8x128xf32>, vector<128x128xf32> -> vector<128x128xf32>
    %41 = arith.addf %39, %40 : vector<128x128xf32>
    %c0_33 = arith.constant 0 : index
    %c0_34 = arith.constant 0 : index
    %c0_35 = arith.constant 0 : index
    %42 = vector.load %arg5[%c0_33, %c0_34, %c0_35] : memref<1x128x128xf32, #tpu.memory_space<vmem>>, vector<1x128x128xf32>
    %43 = vector.shape_cast %42 : vector<1x128x128xf32> to vector<128x128xf32>
    %44 = vector.shape_cast %41 : vector<128x128xf32> to vector<1x128x128xf32>
    tpu.vector_store %arg5[%c0_33, %c0_34, %c0_35], %44 {strides = array<i32>} : memref<1x128x128xf32, #tpu.memory_space<vmem>>, vector<1x128x128xf32>,
    return
  }
  func.func @transform_0(%arg0: i32, %arg1: i32) -> (i32, i32) {
    %c1_i32 = arith.constant 1 : i32
    %0 = arith.muli %arg0, %c1_i32 : i32
    %1 = arith.addi %0, %arg1 : i32
    %c0_i32 = arith.constant 0 : i32
    %2 = arith.minsi %1, %c0_i32 : i32
    %c0_i32_0 = arith.constant 0 : i32
    %c0_i32_1 = arith.constant 0 : i32
    return %2, %c0_i32_0 : i32, i32
  }
  func.func @transform_1(%arg0: i32, %arg1: i32) -> (i32, i32) {
    %c1_i32 = arith.constant 1 : i32
    %0 = arith.muli %arg0, %c1_i32 : i32
    %1 = arith.addi %0, %arg1 : i32
    %c0_i32 = arith.constant 0 : i32
    %2 = arith.minsi %1, %c0_i32 : i32
    %c0_i32_0 = arith.constant 0 : i32
    %c0_i32_1 = arith.constant 0 : i32
    return %2, %c0_i32_0 : i32, i32
  }
  func.func @transform_2(%arg0: i32, %arg1: i32) -> (i32, i32, i32) {
    %c0_i32 = arith.constant 0 : i32
    %c0_i32_0 = arith.constant 0 : i32
    %c0_i32_1 = arith.constant 0 : i32
    return %arg0, %c0_i32, %c0_i32_0 : i32, i32, i32
  }
  func.func @transform_3(%arg0: i32, %arg1: i32) -> (i32, i32, i32) {
    %c0_i32 = arith.constant 0 : i32
    %c0_i32_0 = arith.constant 0 : i32
    %c0_i32_1 = arith.constant 0 : i32
    return %arg0, %c0_i32, %c0_i32_0 : i32, i32, i32
  }
  func.func @transform_4(%arg0: i32, %arg1: i32) -> (i32, i32, i32) {
    %c0_i32 = arith.constant 0 : i32
    %c0_i32_0 = arith.constant 0 : i32
    %c0_i32_1 = arith.constant 0 : i32
    return %arg0, %c0_i32, %c0_i32_0 : i32, i32, i32
  }
}

</mosaic_0001>

<llo_original>
// kernel: vicreg_loss.1
$region0: #{vicreg_loss.1}
  #allocation0 [shape = 'u32[]', space=smem, size = 0x4, offset = 0x4, fixed_abs, tag = 'smem constant byte address 0x4 - core index']
  #allocation1 [shape = 'u32[144,128]{1,0:T(1,128)}', space=vmem, size = 0x12000, scoped, tag = 'internal scratch']
  %s0 = inlined_call_operand.vmem [shape: f32[8,128], index: 0, kind: input, shape index: {}]
  %s1 = inlined_call_operand.vmem [shape: f32[8,128], index: 1, kind: input, shape index: {}]
  %s2 = inlined_call_operand.vmem [shape: f32[1,128,128], index: 2, kind: output, shape index: {0}]
  %s3 = inlined_call_operand.vmem [shape: f32[1,128,128], index: 3, kind: output, shape index: {1}]
  %s4 = inlined_call_operand.vmem [shape: f32[1,8,128], index: 4, kind: output, shape index: {2}]
  %5 = xla_tuple %s2, %s3, %s4
  %s6 = sld [smem:[#allocation0]]
  $region38: #{vicreg_loss.1} parent=0
    _
  %s8 = ssub.s32 1, %s6
  %s9 = scalar_select 0, %s8, %s6
  // Predicated region
  $region2: #{vicreg_loss.1} parent=0 // pred_check
    _
  $region3: #{vicreg_loss.1} parent=0 // pred_check_branch
    %11 = sbr.rel (0) target = $region5
  $region4: #{vicreg_loss.1} parent=0 // pred_region
    %s12 = sadd.s32 0, 0
    %p13 = scmp.lt.s32.totalorder %s12, 0
    %s14 = scalar_select %p13, %s12, 0
    %p15 = scmp.lt.s32.totalorder %s14, 0
    %s16 = scalar_select %p15, %s14, 0
    %s17 = smul.addr %s16, 8
    %s18 = scalar_lea.vmem %s0, %s17
    %s19 = sadd.s32 0, 0
    %p20 = scmp.lt.s32.totalorder %s19, 0
    %s21 = scalar_select %p20, %s19, 0
  $region5: #{vicreg_loss.1} parent=0 // pred_fallthru
    _
  // Predicated region
  $region6: #{vicreg_loss.1} parent=0 // pred_check
    _
  $region7: #{vicreg_loss.1} parent=0 // pred_check_branch
    %23 = sbr.rel (0) target = $region9
  $region8: #{vicreg_loss.1} parent=0 // pred_region
    %s24 = sadd.s32 0, 0
    %p25 = scmp.lt.s32.totalorder %s24, 0
    %s26 = scalar_select %p25, %s24, 0
    %p27 = scmp.lt.s32.totalorder %s26, 0
    %s28 = scalar_select %p27, %s26, 0
    %s29 = smul.addr %s28, 8
    %s30 = scalar_lea.vmem %s1, %s29
    %s31 = sadd.s32 0, 0
    %p32 = scmp.lt.s32.totalorder %s31, 0
    %s33 = scalar_select %p32, %s31, 0
  $region9: #{vicreg_loss.1} parent=0 // pred_fallthru
    _
  %s34 = sadd.s32 0, 0
  %p35 = scmp.lt.s32.totalorder %s34, 0
  %s36 = scalar_select %p35, %s34, 0
  %p37 = scmp.lt.s32.totalorder %s36, 0
  %s38 = scalar_select %p37, %s36, 0
  %s39 = smul.addr %s38, 8
  %s40 = scalar_lea.vmem %s0, %s39
  %s41 = sadd.s32 0, 0
  %p42 = scmp.lt.s32.totalorder %s41, 0
  %s43 = scalar_select %p42, %s41, 0
  %p44 = scmp.lt.s32.totalorder %s43, 0
  %s45 = scalar_select %p44, %s43, 0
  %s46 = smul.addr %s45, 8
  %s47 = scalar_lea.vmem %s1, %s46
  %s48 = sadd.s32 0, 0
  %p49 = scmp.lt.s32.totalorder %s48, 0
  %s50 = scalar_select %p49, %s48, 0
  %p51 = scmp.lt.s32.totalorder %s50, 0
  %s52 = scalar_select %p51, %s50, 0
  %s53 = smul.addr %s52, 8
  %s54 = scalar_lea.vmem %s0, %s53
  %s55 = sadd.s32 0, 0
  %p56 = scmp.lt.s32.totalorder %s55, 0
  %s57 = scalar_select %p56, %s55, 0
  %s58 = sadd.s32 0, 0
  %p59 = scmp.lt.s32.totalorder %s58, 0
  %s60 = scalar_select %p59, %s58, 0
  %p61 = scmp.lt.s32.totalorder %s60, 0
  %s62 = scalar_select %p61, %s60, 0
  %s63 = smul.addr %s62, 8
  %s64 = scalar_lea.vmem %s1, %s63
  %s65 = sadd.s32 0, 0
  %p66 = scmp.lt.s32.totalorder %s65, 0
  %s67 = scalar_select %p66, %s65, 0
  %p68 = scmp.eq.s32.totalorder 0, 0
  // Predicated region
  $region10: #{vicreg_loss.1} parent=0 // pred_check
    %p69 = pneg %p68
  $region11: #{vicreg_loss.1} parent=0 // pred_check_branch
    %71 = sbr.rel (%p69) target = $region13
  $region12: #{vicreg_loss.1} parent=0 // pred_region
    %72 = vst [vmem:[%s2] sm:$0xff] 0.0
    %73 = vst [vmem:[%s2 + $0x8] sm:$0xff] 0.0
    %74 = vst [vmem:[%s2 + $0x10] sm:$0xff] 0.0
    %75 = vst [vmem:[%s2 + $0x18] sm:$0xff] 0.0
    %76 = vst [vmem:[%s2 + $0x20] sm:$0xff] 0.0
    %77 = vst [vmem:[%s2 + $0x28] sm:$0xff] 0.0
    %78 = vst [vmem:[%s2 + $0x30] sm:$0xff] 0.0
    %79 = vst [vmem:[%s2 + $0x38] sm:$0xff] 0.0
    %80 = vst [vmem:[%s2 + $0x40] sm:$0xff] 0.0
    %81 = vst [vmem:[%s2 + $0x48] sm:$0xff] 0.0
    %82 = vst [vmem:[%s2 + $0x50] sm:$0xff] 0.0
    %83 = vst [vmem:[%s2 + $0x58] sm:$0xff] 0.0
    %84 = vst [vmem:[%s2 + $0x60] sm:$0xff] 0.0
    %85 = vst [vmem:[%s2 + $0x68] sm:$0xff] 0.0
    %86 = vst [vmem:[%s2 + $0x70] sm:$0xff] 0.0
    %87 = vst [vmem:[%s2 + $0x78] sm:$0xff] 0.0
    %88 = vst [vmem:[%s3] sm:$0xff] 0.0
    %89 = vst [vmem:[%s3 + $0x8] sm:$0xff] 0.0
    %90 = vst [vmem:[%s3 + $0x10] sm:$0xff] 0.0
    %91 = vst [vmem:[%s3 + $0x18] sm:$0xff] 0.0
    %92 = vst [vmem:[%s3 + $0x20] sm:$0xff] 0.0
    %93 = vst [vmem:[%s3 + $0x28] sm:$0xff] 0.0
    %94 = vst [vmem:[%s3 + $0x30] sm:$0xff] 0.0
    %95 = vst [vmem:[%s3 + $0x38] sm:$0xff] 0.0
    %96 = vst [vmem:[%s3 + $0x40] sm:$0xff] 0.0
    %97 = vst [vmem:[%s3 + $0x48] sm:$0xff] 0.0
    %98 = vst [vmem:[%s3 + $0x50] sm:$0xff] 0.0
    %99 = vst [vmem:[%s3 + $0x58] sm:$0xff] 0.0
    %100 = vst [vmem:[%s3 + $0x60] sm:$0xff] 0.0
    %101 = vst [vmem:[%s3 + $0x68] sm:$0xff] 0.0
    %102 = vst [vmem:[%s3 + $0x70] sm:$0xff] 0.0
    %103 = vst [vmem:[%s3 + $0x78] sm:$0xff] 0.0
    %104 = vst [vmem:[%s4] sm:$0xff] 0.0
  $region13: #{vicreg_loss.1} parent=0 // pred_fallthru
    _
  %v105 = vld [vmem:[%s54] sm:$0xff]
  %v106 = vld [vmem:[%s64] sm:$0xff]
  %v107 = vld [vmem:[%s4] sm:$0x1]
  %v108 = vrot.slane %v105, 4
  %v109 = vadd.f32 %v105, %v108
  %v110 = vrot.slane %v109, 2
  %v111 = vadd.f32 %v109, %v110
  %v112 = vrot.slane %v111, 1
  %v113 = vadd.f32 %v111, %v112
  %v114 = vadd.f32 %v107, %v113
  %115 = vst [vmem:[%s4] sm:$0x1] %v114
  %v116 = vld [vmem:[%s4 + $0x1] sm:$0x1]
  %v117 = vrot.slane %v106, 4
  %v118 = vadd.f32 %v106, %v117
  %v119 = vrot.slane %v118, 2
  %v120 = vadd.f32 %v118, %v119
  %v121 = vrot.slane %v120, 1
  %v122 = vadd.f32 %v120, %v121
  %v123 = vadd.f32 %v116, %v122
  %124 = vst [vmem:[%s4 + $0x1] sm:$0x1] %v123
  %v125 = vsub.f32 %v106, %v105
  %v126 = vld [vmem:[%s4 + $0x2] sm:$0x1]
  %v127 = vmul.f32 %v125, %v125
  %v128 = vrot.slane %v127, 4
  %v129 = vadd.f32 %v127, %v128
  %v130 = vrot.slane %v129, 2
  %v131 = vadd.f32 %v129, %v130
  %v132 = vrot.slane %v131, 1
  %v133 = vadd.f32 %v131, %v132
  %v134 = vadd.f32 %v126, %v133
  %135 = vst [vmem:[%s4 + $0x2] sm:$0x1] %v134
  %v136 = vld [vmem:[%s2] sm:$0xff]
  %v137 = vld [vmem:[%s2 + $0x8] sm:$0xff]
  %v138 = vld [vmem:[%s2 + $0x10] sm:$0xff]
  %v139 = vld [vmem:[%s2 + $0x18] sm:$0xff]
  %v140 = vld [vmem:[%s2 + $0x20] sm:$0xff]
  %v141 = vld [vmem:[%s2 + $0x28] sm:$0xff]
  %v142 = vld [vmem:[%s2 + $0x30] sm:$0xff]
  %v143 = vld [vmem:[%s2 + $0x38] sm:$0xff]
  %v144 = vld [vmem:[%s2 + $0x40] sm:$0xff]
  %v145 = vld [vmem:[%s2 + $0x48] sm:$0xff]
  %v146 = vld [vmem:[%s2 + $0x50] sm:$0xff]
  %v147 = vld [vmem:[%s2 + $0x58] sm:$0xff]
  %v148 = vld [vmem:[%s2 + $0x60] sm:$0xff]
  %v149 = vld [vmem:[%s2 + $0x68] sm:$0xff]
  %v150 = vld [vmem:[%s2 + $0x70] sm:$0xff]
  %v151 = vld [vmem:[%s2 + $0x78] sm:$0xff]
  %152 = vxpose.xlu0.b32.start [1/16] %v105, 128
  %153 = vxpose.xlu0.b32.cont [2/16] 0.0, 128
  %154 = vxpose.xlu0.b32.cont [3/16] 0.0, 128
  %155 = vxpose.xlu0.b32.cont [4/16] 0.0, 128
  %156 = vxpose.xlu0.b32.cont [5/16] 0.0, 128
  %157 = vxpose.xlu0.b32.cont [6/16] 0.0, 128
  %158 = vxpose.xlu0.b32.cont [7/16] 0.0, 128
  %159 = vxpose.xlu0.b32.cont [8/16] 0.0, 128
  %160 = vxpose.xlu0.b32.cont [9/16] 0.0, 128
  %161 = vxpose.xlu0.b32.cont [10/16] 0.0, 128
  %162 = vxpose.xlu0.b32.cont [11/16] 0.0, 128
  %163 = vxpose.xlu0.b32.cont [12/16] 0.0, 128
  %164 = vxpose.xlu0.b32.cont [13/16] 0.0, 128
  %165 = vxpose.xlu0.b32.cont [14/16] 0.0, 128
  %166 = vxpose.xlu0.b32.cont [15/16] 0.0, 128
  %167 = vxpose.xlu0.b32.end [16/16] 0.0, 128
  %v168 = vpop.trf.xlu0
  %v169 = vpop.trf.xlu0
  %v170 = vpop.trf.xlu0
  %v171 = vpop.trf.xlu0
  %v172 = vpop.trf.xlu0
  %v173 = vpop.trf.xlu0
  %v174 = vpop.trf.xlu0
  %v175 = vpop.trf.xlu0
  %v176 = vpop.trf.xlu0
  %v177 = vpop.trf.xlu0
  %v178 = vpop.trf.xlu0
  %v179 = vpop.trf.xlu0
  %v180 = vpop.trf.xlu0
  %v181 = vpop.trf.xlu0
  %v182 = vpop.trf.xlu0
  %v183 = vpop.trf.xlu0
  %vm184 = vcmask 64512
  %v186 = vsel %vm184, %v168, 0
  %v189 = vsel %vm184, %v169, 0
  %v192 = vsel %vm184, %v170, 0
  %v195 = vsel %vm184, %v171, 0
  %v198 = vsel %vm184, %v172, 0
  %v201 = vsel %vm184, %v173, 0
  %v204 = vsel %vm184, %v174, 0
  %v207 = vsel %vm184, %v175, 0
  %v210 = vsel %vm184, %v176, 0
  %v213 = vsel %vm184, %v177, 0
  %v216 = vsel %vm184, %v178, 0
  %v219 = vsel %vm184, %v179, 0
  %v222 = vsel %vm184, %v180, 0
  %v225 = vsel %vm184, %v181, 0
  %v228 = vsel %vm184, %v182, 0
  %v231 = vsel %vm184, %v183, 0
  %233 = vmatprep.subr.mxu0 0.0
  %234 = vmatpush1.msra.mxu0 0.0
  %235 = vmatprep.subr.mxu0 0.0
  %236 = vmatpush1.msra.mxu0 0.0
  %237 = vmatprep.subr.mxu0 0.0
  %238 = vmatpush1.msra.mxu0 0.0
  %239 = vmatprep.subr.mxu0 0.0
  %240 = vmatpush1.msra.mxu0 0.0
  %241 = vmatprep.subr.mxu0 0.0
  %242 = vmatpush1.msra.mxu0 0.0
  %243 = vmatprep.subr.mxu0 0.0
  %244 = vmatpush1.msra.mxu0 0.0
  %245 = vmatprep.subr.mxu0 0.0
  %246 = vmatpush1.msra.mxu0 0.0
  %247 = vmatprep.subr.mxu0 0.0
  %248 = vmatpush1.msra.mxu0 0.0
  %249 = vmatprep.subr.mxu0 0.0
  %250 = vmatpush1.msra.mxu0 0.0
  %251 = vmatprep.subr.mxu0 0.0
  %252 = vmatpush1.msra.mxu0 0.0
  %253 = vmatprep.subr.mxu0 0.0
  %254 = vmatpush1.msra.mxu0 0.0
  %255 = vmatprep.subr.mxu0 0.0
  %256 = vmatpush1.msra.mxu0 0.0
  %257 = vmatprep.subr.mxu0 0.0
  %258 = vmatpush1.msra.mxu0 0.0
  %259 = vmatprep.subr.mxu0 0.0
  %260 = vmatpush1.msra.mxu0 0.0
  %261 = vmatprep.subr.mxu0 0.0
  %262 = vmatpush1.msra.mxu0 0.0
  %263 = vmatprep.subr.mxu0 0.0
  %264 = vmatpush1.msra.mxu0 %v105
  %265 = vmatprep.subr.mxu0 0.0
  %266 = vmatpush2.msra.mxu0 0.0
  %267 = vmatprep.subr.mxu0 0.0
  %268 = vmatpush2.msra.mxu0 0.0
  %269 = vmatprep.subr.mxu0 0.0
  %270 = vmatpush2.msra.mxu0 0.0
  %271 = vmatprep.subr.mxu0 0.0
  %272 = vmatpush2.msra.mxu0 0.0
  %273 = vmatprep.subr.mxu0 0.0
  %274 = vmatpush2.msra.mxu0 0.0
  %275 = vmatprep.subr.mxu0 0.0
  %276 = vmatpush2.msra.mxu0 0.0
  %277 = vmatprep.subr.mxu0 0.0
  %278 = vmatpush2.msra.mxu0 0.0
  %279 = vmatprep.subr.mxu0 0.0
  %280 = vmatpush2.msra.mxu0 0.0
  %281 = vmatprep.subr.mxu0 0.0
  %282 = vmatpush2.msra.mxu0 0.0
  %283 = vmatprep.subr.mxu0 0.0
  %284 = vmatpush2.msra.mxu0 0.0
  %285 = vmatprep.subr.mxu0 0.0
  %286 = vmatpush2.msra.mxu0 0.0
  %287 = vmatprep.subr.mxu0 0.0
  %288 = vmatpush2.msra.mxu0 0.0
  %289 = vmatprep.subr.mxu0 0.0
  %290 = vmatpush2.msra.mxu0 0.0
  %291 = vmatprep.subr.mxu0 0.0
  %292 = vmatpush2.msra.mxu0 0.0
  %293 = vmatprep.subr.mxu0 0.0
  %294 = vmatpush2.msra.mxu0 0.0
  %295 = vmatprep.subr.mxu0 0.0
  %296 = vmatpush2.msra.mxu0 0.0
  %297 = vmatprep.mubr.f32.mxu0 0.0
  %298 = vmatmul.mubr.f32.gmra.mxu0 %v186
  %v299 = vpop.f32.mrf.mxu0
  %v300 = vadd.f32 0.0, %v299
  %v301 = vpop.f32.mrf.mxu0
  %302 = vmatprep.mubr.f32.mxu0 0.0
  %303 = vmatmul.mubr.f32.gmra.mxu0 %v189
  %v304 = vpop.f32.mrf.mxu0
  %v305 = vadd.f32 0.0, %v304
  %v306 = vpop.f32.mrf.mxu0
  %307 = vmatprep.mubr.f32.mxu0 0.0
  %308 = vmatmul.mubr.f32.gmra.mxu0 %v192
  %v309 = vpop.f32.mrf.mxu0
  %v310 = vadd.f32 0.0, %v309
  %v311 = vpop.f32.mrf.mxu0
  %312 = vmatprep.mubr.f32.mxu0 0.0
  %313 = vmatmul.mubr.f32.gmra.mxu0 %v195
  %v314 = vpop.f32.mrf.mxu0
  %v315 = vadd.f32 0.0, %v314
  %v316 = vpop.f32.mrf.mxu0
  %317 = vmatprep.mubr.f32.mxu0 0.0
  %318 = vmatmul.mubr.f32.gmra.mxu0 %v198
  %v319 = vpop.f32.mrf.mxu0
  %v320 = vadd.f32 0.0, %v319
  %v321 = vpop.f32.mrf.mxu0
  %322 = vmatprep.mubr.f32.mxu0 0.0
  %323 = vmatmul.mubr.f32.gmra.mxu0 %v201
  %v324 = vpop.f32.mrf.mxu0
  %v325 = vadd.f32 0.0, %v324
  %v326 = vpop.f32.mrf.mxu0
  %327 = vmatprep.mubr.f32.mxu0 0.0
  %328 = vmatmul.mubr.f32.gmra.mxu0 %v204
  %v329 = vpop.f32.mrf.mxu0
  %v330 = vadd.f32 0.0, %v329
  %v331 = vpop.f32.mrf.mxu0
  %332 = vmatprep.mubr.f32.mxu0 0.0
  %333 = vmatmul.mubr.f32.gmra.mxu0 %v207
  %v334 = vpop.f32.mrf.mxu0
  %v335 = vadd.f32 0.0, %v334
  %v336 = vpop.f32.mrf.mxu0
  %337 = vmatprep.mubr.f32.mxu0 0.0
  %338 = vmatmul.mubr.f32.gmra.mxu0 %v210
  %v339 = vpop.f32.mrf.mxu0
  %v340 = vadd.f32 0.0, %v339
  %v341 = vpop.f32.mrf.mxu0
  %342 = vmatprep.mubr.f32.mxu0 0.0
  %343 = vmatmul.mubr.f32.gmra.mxu0 %v213
  %v344 = vpop.f32.mrf.mxu0
  %v345 = vadd.f32 0.0, %v344
  %v346 = vpop.f32.mrf.mxu0
  %347 = vmatprep.mubr.f32.mxu0 0.0
  %348 = vmatmul.mubr.f32.gmra.mxu0 %v216
  %v349 = vpop.f32.mrf.mxu0
  %v350 = vadd.f32 0.0, %v349
  %v351 = vpop.f32.mrf.mxu0
  %352 = vmatprep.mubr.f32.mxu0 0.0
  %353 = vmatmul.mubr.f32.gmra.mxu0 %v219
  %v354 = vpop.f32.mrf.mxu0
  %v355 = vadd.f32 0.0, %v354
  %v356 = vpop.f32.mrf.mxu0
  %357 = vmatprep.mubr.f32.mxu0 0.0
  %358 = vmatmul.mubr.f32.gmra.mxu0 %v222
  %v359 = vpop.f32.mrf.mxu0
  %v360 = vadd.f32 0.0, %v359
  %v361 = vpop.f32.mrf.mxu0
  %362 = vmatprep.mubr.f32.mxu0 0.0
  %363 = vmatmul.mubr.f32.gmra.mxu0 %v225
  %v364 = vpop.f32.mrf.mxu0
  %v365 = vadd.f32 0.0, %v364
  %v366 = vpop.f32.mrf.mxu0
  %367 = vmatprep.mubr.f32.mxu0 0.0
  %368 = vmatmul.mubr.f32.gmra.mxu0 %v228
  %v369 = vpop.f32.mrf.mxu0
  %v370 = vadd.f32 0.0, %v369
  %v371 = vpop.f32.mrf.mxu0
  %372 = vmatprep.mubr.f32.mxu0 0.0
  %373 = vmatmul.mubr.f32.gmra.mxu0 %v231
  %v374 = vpop.f32.mrf.mxu0
  %v375 = vadd.f32 0.0, %v374
  %v376 = vpop.f32.mrf.mxu0
  %377 = vdwg.mxu0
  %v378 = vadd.f32 %v136, %v300
  %v379 = vadd.f32 %v137, %v305
  %v380 = vadd.f32 %v138, %v310
  %v381 = vadd.f32 %v139, %v315
  %v382 = vadd.f32 %v140, %v320
  %v383 = vadd.f32 %v141, %v325
  %v384 = vadd.f32 %v142, %v330
  %v385 = vadd.f32 %v143, %v335
  %v386 = vadd.f32 %v144, %v340
  %v387 = vadd.f32 %v145, %v345
  %v388 = vadd.f32 %v146, %v350
  %v389 = vadd.f32 %v147, %v355
  %v390 = vadd.f32 %v148, %v360
  %v391 = vadd.f32 %v149, %v365
  %v392 = vadd.f32 %v150, %v370
  %v393 = vadd.f32 %v151, %v375
  %394 = vst [vmem:[%s2] sm:$0xff] %v378
  %395 = vst [vmem:[%s2 + $0x8] sm:$0xff] %v379
  %396 = vst [vmem:[%s2 + $0x10] sm:$0xff] %v380
  %397 = vst [vmem:[%s2 + $0x18] sm:$0xff] %v381
  %398 = vst [vmem:[%s2 + $0x20] sm:$0xff] %v382
  %399 = vst [vmem:[%s2 + $0x28] sm:$0xff] %v383
  %400 = vst [vmem:[%s2 + $0x30] sm:$0xff] %v384
  %401 = vst [vmem:[%s2 + $0x38] sm:$0xff] %v385
  %402 = vst [vmem:[%s2 + $0x40] sm:$0xff] %v386
  %403 = vst [vmem:[%s2 + $0x48] sm:$0xff] %v387
  %404 = vst [vmem:[%s2 + $0x50] sm:$0xff] %v388
  %405 = vst [vmem:[%s2 + $0x58] sm:$0xff] %v389
  %406 = vst [vmem:[%s2 + $0x60] sm:$0xff] %v390
  %407 = vst [vmem:[%s2 + $0x68] sm:$0xff] %v391
  %408 = vst [vmem:[%s2 + $0x70] sm:$0xff] %v392
  %409 = vst [vmem:[%s2 + $0x78] sm:$0xff] %v393
  %v410 = vld [vmem:[%s3] sm:$0xff]
  %v411 = vld [vmem:[%s3 + $0x8] sm:$0xff]
  %v412 = vld [vmem:[%s3 + $0x10] sm:$0xff]
  %v413 = vld [vmem:[%s3 + $0x18] sm:$0xff]
  %v414 = vld [vmem:[%s3 + $0x20] sm:$0xff]
  %v415 = vld [vmem:[%s3 + $0x28] sm:$0xff]
  %v416 = vld [vmem:[%s3 + $0x30] sm:$0xff]
  %v417 = vld [vmem:[%s3 + $0x38] sm:$0xff]
  %v418 = vld [vmem:[%s3 + $0x40] sm:$0xff]
  %v419 = vld [vmem:[%s3 + $0x48] sm:$0xff]
  %v420 = vld [vmem:[%s3 + $0x50] sm:$0xff]
  %v421 = vld [vmem:[%s3 + $0x58] sm:$0xff]
  %v422 = vld [vmem:[%s3 + $0x60] sm:$0xff]
  %v423 = vld [vmem:[%s3 + $0x68] sm:$0xff]
  %v424 = vld [vmem:[%s3 + $0x70] sm:$0xff]
  %v425 = vld [vmem:[%s3 + $0x78] sm:$0xff]
  %426 = vxpose.xlu0.b32.start [1/16] %v106, 128
  %427 = vxpose.xlu0.b32.cont [2/16] 0.0, 128
  %428 = vxpose.xlu0.b32.cont [3/16] 0.0, 128
  %429 = vxpose.xlu0.b32.cont [4/16] 0.0, 128
  %430 = vxpose.xlu0.b32.cont [5/16] 0.0, 128
  %431 = vxpose.xlu0.b32.cont [6/16] 0.0, 128
  %432 = vxpose.xlu0.b32.cont [7/16] 0.0, 128
  %433 = vxpose.xlu0.b32.cont [8/16] 0.0, 128
  %434 = vxpose.xlu0.b32.cont [9/16] 0.0, 128
  %435 = vxpose.xlu0.b32.cont [10/16] 0.0, 128
  %436 = vxpose.xlu0.b32.cont [11/16] 0.0, 128
  %437 = vxpose.xlu0.b32.cont [12/16] 0.0, 128
  %438 = vxpose.xlu0.b32.cont [13/16] 0.0, 128
  %439 = vxpose.xlu0.b32.cont [14/16] 0.0, 128
  %440 = vxpose.xlu0.b32.cont [15/16] 0.0, 128
  %441 = vxpose.xlu0.b32.end [16/16] 0.0, 128
  %v442 = vpop.trf.xlu0
  %v443 = vpop.trf.xlu0
  %v444 = vpop.trf.xlu0
  %v445 = vpop.trf.xlu0
  %v446 = vpop.trf.xlu0
  %v447 = vpop.trf.xlu0
  %v448 = vpop.trf.xlu0
  %v449 = vpop.trf.xlu0
  %v450 = vpop.trf.xlu0
  %v451 = vpop.trf.xlu0
  %v452 = vpop.trf.xlu0
  %v453 = vpop.trf.xlu0
  %v454 = vpop.trf.xlu0
  %v455 = vpop.trf.xlu0
  %v456 = vpop.trf.xlu0
  %v457 = vpop.trf.xlu0
  %v459 = vsel %vm184, %v442, 0
  %v462 = vsel %vm184, %v443, 0
  %v465 = vsel %vm184, %v444, 0
  %v468 = vsel %vm184, %v445, 0
  %v471 = vsel %vm184, %v446, 0
  %v474 = vsel %vm184, %v447, 0
  %v477 = vsel %vm184, %v448, 0
  %v480 = vsel %vm184, %v449, 0
  %v483 = vsel %vm184, %v450, 0
  %v486 = vsel %vm184, %v451, 0
  %v489 = vsel %vm184, %v452, 0
  %v492 = vsel %vm184, %v453, 0
  %v495 = vsel %vm184, %v454, 0
  %v498 = vsel %vm184, %v455, 0
  %v501 = vsel %vm184, %v456, 0
  %v504 = vsel %vm184, %v457, 0
  %506 = vmatprep.subr.mxu0 0.0
  %507 = vmatpush1.msra.mxu0 0.0
  %508 = vmatprep.subr.mxu0 0.0
  %509 = vmatpush1.msra.mxu0 0.0
  %510 = vmatprep.subr.mxu0 0.0
  %511 = vmatpush1.msra.mxu0 0.0
  %512 = vmatprep.subr.mxu0 0.0
  %513 = vmatpush1.msra.mxu0 0.0
  %514 = vmatprep.subr.mxu0 0.0
  %515 = vmatpush1.msra.mxu0 0.0
  %516 = vmatprep.subr.mxu0 0.0
  %517 = vmatpush1.msra.mxu0 0.0
  %518 = vmatprep.subr.mxu0 0.0
  %519 = vmatpush1.msra.mxu0 0.0
  %520 = vmatprep.subr.mxu0 0.0
  %521 = vmatpush1.msra.mxu0 0.0
  %522 = vmatprep.subr.mxu0 0.0
  %523 = vmatpush1.msra.mxu0 0.0
  %524 = vmatprep.subr.mxu0 0.0
  %525 = vmatpush1.msra.mxu0 0.0
  %526 = vmatprep.subr.mxu0 0.0
  %527 = vmatpush1.msra.mxu0 0.0
  %528 = vmatprep.subr.mxu0 0.0
  %529 = vmatpush1.msra.mxu0 0.0
  %530 = vmatprep.subr.mxu0 0.0
  %531 = vmatpush1.msra.mxu0 0.0
  %532 = vmatprep.subr.mxu0 0.0
  %533 = vmatpush1.msra.mxu0 0.0
  %534 = vmatprep.subr.mxu0 0.0
  %535 = vmatpush1.msra.mxu0 0.0
  %536 = vmatprep.subr.mxu0 0.0
  %537 = vmatpush1.msra.mxu0 %v106
  %538 = vmatprep.subr.mxu0 0.0
  %539 = vmatpush2.msra.mxu0 0.0
  %540 = vmatprep.subr.mxu0 0.0
  %541 = vmatpush2.msra.mxu0 0.0
  %542 = vmatprep.subr.mxu0 0.0
  %543 = vmatpush2.msra.mxu0 0.0
  %544 = vmatprep.subr.mxu0 0.0
  %545 = vmatpush2.msra.mxu0 0.0
  %546 = vmatprep.subr.mxu0 0.0
  %547 = vmatpush2.msra.mxu0 0.0
  %548 = vmatprep.subr.mxu0 0.0
  %549 = vmatpush2.msra.mxu0 0.0
  %550 = vmatprep.subr.mxu0 0.0
  %551 = vmatpush2.msra.mxu0 0.0
  %552 = vmatprep.subr.mxu0 0.0
  %553 = vmatpush2.msra.mxu0 0.0
  %554 = vmatprep.subr.mxu0 0.0
  %555 = vmatpush2.msra.mxu0 0.0
  %556 = vmatprep.subr.mxu0 0.0
  %557 = vmatpush2.msra.mxu0 0.0
  %558 = vmatprep.subr.mxu0 0.0
  %559 = vmatpush2.msra.mxu0 0.0
  %560 = vmatprep.subr.mxu0 0.0
  %561 = vmatpush2.msra.mxu0 0.0
  %562 = vmatprep.subr.mxu0 0.0
  %563 = vmatpush2.msra.mxu0 0.0
  %564 = vmatprep.subr.mxu0 0.0
  %565 = vmatpush2.msra.mxu0 0.0
  %566 = vmatprep.subr.mxu0 0.0
  %567 = vmatpush2.msra.mxu0 0.0
  %568 = vmatprep.subr.mxu0 0.0
  %569 = vmatpush2.msra.mxu0 0.0
  %570 = vmatprep.mubr.f32.mxu0 0.0
  %571 = vmatmul.mubr.f32.gmra.mxu0 %v459
  %v572 = vpop.f32.mrf.mxu0
  %v573 = vadd.f32 0.0, %v572
  %v574 = vpop.f32.mrf.mxu0
  %575 = vmatprep.mubr.f32.mxu0 0.0
  %576 = vmatmul.mubr.f32.gmra.mxu0 %v462
  %v577 = vpop.f32.mrf.mxu0
  %v578 = vadd.f32 0.0, %v577
  %v579 = vpop.f32.mrf.mxu0
  %580 = vmatprep.mubr.f32.mxu0 0.0
  %581 = vmatmul.mubr.f32.gmra.mxu0 %v465
  %v582 = vpop.f32.mrf.mxu0
  %v583 = vadd.f32 0.0, %v582
  %v584 = vpop.f32.mrf.mxu0
  %585 = vmatprep.mubr.f32.mxu0 0.0
  %586 = vmatmul.mubr.f32.gmra.mxu0 %v468
  %v587 = vpop.f32.mrf.mxu0
  %v588 = vadd.f32 0.0, %v587
  %v589 = vpop.f32.mrf.mxu0
  %590 = vmatprep.mubr.f32.mxu0 0.0
  %591 = vmatmul.mubr.f32.gmra.mxu0 %v471
  %v592 = vpop.f32.mrf.mxu0
  %v593 = vadd.f32 0.0, %v592
  %v594 = vpop.f32.mrf.mxu0
  %595 = vmatprep.mubr.f32.mxu0 0.0
  %596 = vmatmul.mubr.f32.gmra.mxu0 %v474
  %v597 = vpop.f32.mrf.mxu0
  %v598 = vadd.f32 0.0, %v597
  %v599 = vpop.f32.mrf.mxu0
  %600 = vmatprep.mubr.f32.mxu0 0.0
  %601 = vmatmul.mubr.f32.gmra.mxu0 %v477
  %v602 = vpop.f32.mrf.mxu0
  %v603 = vadd.f32 0.0, %v602
  %v604 = vpop.f32.mrf.mxu0
  %605 = vmatprep.mubr.f32.mxu0 0.0
  %606 = vmatmul.mubr.f32.gmra.mxu0 %v480
  %v607 = vpop.f32.mrf.mxu0
  %v608 = vadd.f32 0.0, %v607
  %v609 = vpop.f32.mrf.mxu0
  %610 = vmatprep.mubr.f32.mxu0 0.0
  %611 = vmatmul.mubr.f32.gmra.mxu0 %v483
  %v612 = vpop.f32.mrf.mxu0
  %v613 = vadd.f32 0.0, %v612
  %v614 = vpop.f32.mrf.mxu0
  %615 = vmatprep.mubr.f32.mxu0 0.0
  %616 = vmatmul.mubr.f32.gmra.mxu0 %v486
  %v617 = vpop.f32.mrf.mxu0
  %v618 = vadd.f32 0.0, %v617
  %v619 = vpop.f32.mrf.mxu0
  %620 = vmatprep.mubr.f32.mxu0 0.0
  %621 = vmatmul.mubr.f32.gmra.mxu0 %v489
  %v622 = vpop.f32.mrf.mxu0
  %v623 = vadd.f32 0.0, %v622
  %v624 = vpop.f32.mrf.mxu0
  %625 = vmatprep.mubr.f32.mxu0 0.0
  %626 = vmatmul.mubr.f32.gmra.mxu0 %v492
  %v627 = vpop.f32.mrf.mxu0
  %v628 = vadd.f32 0.0, %v627
  %v629 = vpop.f32.mrf.mxu0
  %630 = vmatprep.mubr.f32.mxu0 0.0
  %631 = vmatmul.mubr.f32.gmra.mxu0 %v495
  %v632 = vpop.f32.mrf.mxu0
  %v633 = vadd.f32 0.0, %v632
  %v634 = vpop.f32.mrf.mxu0
  %635 = vmatprep.mubr.f32.mxu0 0.0
  %636 = vmatmul.mubr.f32.gmra.mxu0 %v498
  %v637 = vpop.f32.mrf.mxu0
  %v638 = vadd.f32 0.0, %v637
  %v639 = vpop.f32.mrf.mxu0
  %640 = vmatprep.mubr.f32.mxu0 0.0
  %641 = vmatmul.mubr.f32.gmra.mxu0 %v501
  %v642 = vpop.f32.mrf.mxu0
  %v643 = vadd.f32 0.0, %v642
  %v644 = vpop.f32.mrf.mxu0
  %645 = vmatprep.mubr.f32.mxu0 0.0
  %646 = vmatmul.mubr.f32.gmra.mxu0 %v504
  %v647 = vpop.f32.mrf.mxu0
  %v648 = vadd.f32 0.0, %v647
  %v649 = vpop.f32.mrf.mxu0
  %650 = vdwg.mxu0
  %v651 = vadd.f32 %v410, %v573
  %v652 = vadd.f32 %v411, %v578
  %v653 = vadd.f32 %v412, %v583
  %v654 = vadd.f32 %v413, %v588
  %v655 = vadd.f32 %v414, %v593
  %v656 = vadd.f32 %v415, %v598
  %v657 = vadd.f32 %v416, %v603
  %v658 = vadd.f32 %v417, %v608
  %v659 = vadd.f32 %v418, %v613
  %v660 = vadd.f32 %v419, %v618
  %v661 = vadd.f32 %v420, %v623
  %v662 = vadd.f32 %v421, %v628
  %v663 = vadd.f32 %v422, %v633
  %v664 = vadd.f32 %v423, %v638
  %v665 = vadd.f32 %v424, %v643
  %v666 = vadd.f32 %v425, %v648
  %667 = vst [vmem:[%s3] sm:$0xff] %v651
  %668 = vst [vmem:[%s3 + $0x8] sm:$0xff] %v652
  %669 = vst [vmem:[%s3 + $0x10] sm:$0xff] %v653
  %670 = vst [vmem:[%s3 + $0x18] sm:$0xff] %v654
  %671 = vst [vmem:[%s3 + $0x20] sm:$0xff] %v655
  %672 = vst [vmem:[%s3 + $0x28] sm:$0xff] %v656
  %673 = vst [vmem:[%s3 + $0x30] sm:$0xff] %v657
  %674 = vst [vmem:[%s3 + $0x38] sm:$0xff] %v658
  %675 = vst [vmem:[%s3 + $0x40] sm:$0xff] %v659
  %676 = vst [vmem:[%s3 + $0x48] sm:$0xff] %v660
  %677 = vst [vmem:[%s3 + $0x50] sm:$0xff] %v661
  %678 = vst [vmem:[%s3 + $0x58] sm:$0xff] %v662
  %679 = vst [vmem:[%s3 + $0x60] sm:$0xff] %v663
  %680 = vst [vmem:[%s3 + $0x68] sm:$0xff] %v664
  %681 = vst [vmem:[%s3 + $0x70] sm:$0xff] %v665
  %682 = vst [vmem:[%s3 + $0x78] sm:$0xff] %v666
  // Predicated region
  $region14: #{vicreg_loss.1} parent=0 // pred_check
    _
  $region15: #{vicreg_loss.1} parent=0 // pred_check_branch
    %684 = sbr.rel (0) target = $region17
  $region16: #{vicreg_loss.1} parent=0 // pred_region
    _
  $region17: #{vicreg_loss.1} parent=0 // pred_fallthru
    _
  // Predicated region
  $region18: #{vicreg_loss.1} parent=0 // pred_check
    _
  $region19: #{vicreg_loss.1} parent=0 // pred_check_branch
    %686 = sbr.rel (0) target = $region21
  $region20: #{vicreg_loss.1} parent=0 // pred_region
    _
  $region21: #{vicreg_loss.1} parent=0 // pred_fallthru
    _
  // Predicated region
  $region22: #{vicreg_loss.1} parent=0 // pred_check
    _
  $region23: #{vicreg_loss.1} parent=0 // pred_check_branch
    %688 = sbr.rel (0) target = $region25
  $region24: #{vicreg_loss.1} parent=0 // pred_region
    _
  $region25: #{vicreg_loss.1} parent=0 // pred_fallthru
    _
  // Predicated region
  $region26: #{vicreg_loss.1} parent=0 // pred_check
    _
  $region27: #{vicreg_loss.1} parent=0 // pred_check_branch
    %690 = sbr.rel (0) target = $region29
  $region28: #{vicreg_loss.1} parent=0 // pred_region
    _
  $region29: #{vicreg_loss.1} parent=0 // pred_fallthru
    _
  // Predicated region
  $region30: #{vicreg_loss.1} parent=0 // pred_check
    _
  $region31: #{vicreg_loss.1} parent=0 // pred_check_branch
    %692 = sbr.rel (0) target = $region33
  $region32: #{vicreg_loss.1} parent=0 // pred_region
    _
  $region33: #{vicreg_loss.1} parent=0 // pred_fallthru
    _
  // Predicated region
  $region34: #{vicreg_loss.1} parent=0 // pred_check
    _
  $region35: #{vicreg_loss.1} parent=0 // pred_check_branch
    %694 = sbr.rel (0) target = $region37
  $region36: #{vicreg_loss.1} parent=0 // pred_region
    _
  $region37: #{vicreg_loss.1} parent=0 // pred_fallthru
    _

</llo_original>
